<compile_context>
chip_gen: v7x
topology: tpu7x:2x2x1
jax: 0.10.0
libtpu: 0.0.40
codegen_flags: <defaults>
</compile_context>

<pallas_src>
import functools

import jax
import jax.numpy as jnp
from jax.experimental import pallas as pl
from jax.experimental.pallas import tpu as pltpu


def _round_up(n, m):
    return ((n + m - 1) // m) * m


# ---------------------------------------------------------------------------
# Kernel 1: fused projection
#   wh = x @ W                 (projected node features)
#   s1 = x @ (W @ a1) == Wh @ a1   (per-query attention score)
#   s2 = x @ (W @ a2) == Wh @ a2   (per-key   attention score)
# Both degenerate [N,F_out] x [F_out,1] matmuls are folded into the MXU pass.
# ---------------------------------------------------------------------------
def proj_kernel(x_ref, w_ref, a12_ref, wh_ref, s1_ref, s2_ref):
    x = x_ref[...]
    wh_ref[...] = jnp.dot(x, w_ref[...], preferred_element_type=jnp.float32)
    sc = jnp.dot(x, a12_ref[...], preferred_element_type=jnp.float32)  # (tm, 2)
    s1_ref[...] = sc[:, 0:1]
    s2_ref[...] = sc[:, 1:2]


def _projection(x, w, a12, *, tm):
    n, f_in = x.shape
    f_out = w.shape[1]
    return pl.pallas_call(
        proj_kernel,
        out_shape=(
            jax.ShapeDtypeStruct((n, f_out), jnp.float32),   # Wh
            jax.ShapeDtypeStruct((n, 1), jnp.float32),       # s1 (query score)
            jax.ShapeDtypeStruct((n, 1), jnp.float32),       # s2 (key score)
        ),
        grid_spec=pltpu.PrefetchScalarGridSpec(
            num_scalar_prefetch=0,
            grid=(n // tm,),
            in_specs=[
                pl.BlockSpec((tm, f_in), lambda i: (i, 0)),    # x row tile
                pl.BlockSpec((f_in, f_out), lambda i: (0, 0)),  # W (resident)
                pl.BlockSpec((f_in, 2), lambda i: (0, 0)),      # [W@a1 | W@a2]
            ],
            out_specs=[
                pl.BlockSpec((tm, f_out), lambda i: (i, 0)),
                pl.BlockSpec((tm, 1), lambda i: (i, 0)),
                pl.BlockSpec((tm, 1), lambda i: (i, 0)),
            ],
        ),
        compiler_params=pltpu.CompilerParams(
            dimension_semantics=("parallel",)),
        cost_estimate=pl.CostEstimate(
            flops=2 * n * f_in * (f_out + 2),
            transcendentals=0,
            bytes_accessed=(n * f_in + f_in * (f_out + 2) + n * (f_out + 2)) * 4),
    )(x, w, a12)


# ---------------------------------------------------------------------------
# Kernel 2: masked attention softmax + aggregation (flash/online softmax)
# grid = (Np // tq  [parallel],  Np // tk  [arbitrary/reduction])
# ---------------------------------------------------------------------------
def gat_attn_kernel(s1_ref, s2_ref, wh_ref, adj_ref, out_ref,
                    m_scr, l_scr, acc_scr,
                    *, leaky_alpha, elu_alpha, tk, wh_resident):
    ki = pl.program_id(1)

    @pl.when(ki == 0)
    def _init():
        m_scr[...] = jnp.full_like(m_scr, -9.0e15)
        l_scr[...] = jnp.zeros_like(l_scr)
        acc_scr[...] = jnp.zeros_like(acc_scr)

    # e = LeakyReLU(s1_i + s2_j): the key score is already row-layout, so this
    # is a pure VPU broadcast add (no in-loop transpose); max-form LeakyReLU.
    e = s1_ref[...] + s2_ref[...]                      # (tq,1)+(1,tk) -> (tq,tk)
    e = jnp.maximum(e, leaky_alpha * e)
    # Single select for the adjacency mask; masked logits underflow to exactly
    # 0.0 inside exp() below, so no second select is needed, and an all-masked
    # row degenerates to uniform attention exactly like the reference softmax.
    e = jnp.where(adj_ref[...] > 0, e, -9.0e15)

    m_prev = m_scr[...]
    m_new = jnp.maximum(m_prev, jnp.max(e, axis=1, keepdims=True))
    scale = jnp.exp(m_prev - m_new)
    p = jnp.exp(e - m_new)                             # masked lanes -> 0.0

    if wh_resident:
        k0 = pl.multiple_of(ki * tk, tk)
        wh_tile = wh_ref[pl.ds(k0, tk), :]             # slice of resident Wh
    else:
        wh_tile = wh_ref[...]                          # streamed (tk, F_out) tile

    l_scr[...] = scale * l_scr[...] + jnp.sum(p, axis=1, keepdims=True)
    acc_scr[...] = scale * acc_scr[...] + jnp.dot(
        p, wh_tile, preferred_element_type=jnp.float32)
    m_scr[...] = m_new

    @pl.when(ki == pl.num_programs(1) - 1)
    def _finalize():
        # TODO(synk): F.dropout(attention, p, training) -- eval mode assumed
        #             (identity); training mode would need pltpu.prng_* bits.
        # Exact divide: pl.reciprocal(approx=True) has ~2^-8 relative error and
        # previously broke the 2e-3 tolerance.
        h = acc_scr[...] / l_scr[...]
        # concat=True -> activation (ELU); clamp the exp argument to <= 0.
        out_ref[...] = jnp.where(
            h > 0, h, elu_alpha * (jnp.exp(jnp.minimum(h, 0.0)) - 1.0))


def gat_forward(x, W, a, adj, *, leaky_alpha=0.2, elu_alpha=1.0):
    N, _ = x.shape
    F_out = W.shape[1]

    # ---- tile selection (powers of two; N is padded so every axis divides) --
    tk = max(128, min(2048, pl.next_power_of_2(N)))
    while tk > 256 and _round_up(N, tk) - N > N // 8:   # cap padding waste
        tk //= 2
    Np = _round_up(N, tk)
    tq = min(512, tk)
    while tq > 128 and Np // tq < 2:   # keep >= 2 query tiles (v7x megacore)
        tq //= 2
    tm = tk                            # projection row tile (tq | tk | Np)

    # ---- pad the node dimension; padded rows/cols are fully masked ----------
    if Np != N:
        x = jnp.pad(x, ((0, Np - N), (0, 0)))
        adj = jnp.pad(adj, ((0, Np - N), (0, Np - N)))

    # Fold both attention-vector matmuls into the projection pass:
    #   a12[:, 0] = W @ a1, a12[:, 1] = W @ a2
    a12 = W.astype(jnp.float32) @ a.reshape(2, F_out).T.astype(jnp.float32)

    wh, s1, s2 = _projection(x.astype(jnp.float32), W.astype(jnp.float32),
                             a12, tm=tm)
    # Tiny (Np*4 B) XLA transpose so the attention hot loop never relayouts.
    s2_row = s2.T                                             # (1, Np)

    # Keep Wh VMEM-resident (one HBM read total) when it fits; lane-padded
    # footprint is Np * 128 * 4 B per buffer.  Fall back to streamed tiles
    # above ~16K nodes (safe even on v7x's 64 MiB VMEM).
    wh_resident = Np * 128 * 4 * 2 <= (16 << 20)
    if wh_resident:
        wh_spec = pl.BlockSpec((Np, F_out), lambda qi, ki: (0, 0))
        wh_bytes = Np * F_out * 4
    else:
        wh_spec = pl.BlockSpec((tk, F_out), lambda qi, ki: (ki, 0))
        wh_bytes = (Np // tq) * Np * F_out * 4

    # Derived VMEM budget: 2x-buffered tiles + scratch + margin (>= default).
    adj_itemsize = jnp.dtype(adj.dtype).itemsize
    fo_pad = _round_up(F_out, 128)
    wh_rows = Np if wh_resident else tk
    per_buf = (tq * tk * adj_itemsize + wh_rows * fo_pad * 4
               + tq * 128 * 4 + 8 * tk * 4 + tq * fo_pad * 4)
    scratch_bytes = 2 * tq * 128 * 4 + tq * fo_pad * 4
    vmem_limit = int(min(max(4 * per_buf + scratch_bytes + (8 << 20), 32 << 20),
                         48 << 20))

    kernel = functools.partial(gat_attn_kernel,
                               leaky_alpha=float(leaky_alpha),
                               elu_alpha=float(elu_alpha),
                               tk=tk, wh_resident=wh_resident)

    # TODO(synk): for multi-head GAT (concat=True, nheads > 1) fuse the heads
    #             so the Wh/output last dim reaches >= 128 lanes and the N^2
    #             adjacency stream is read once, not once per head.
    out = pl.pallas_call(
        kernel,
        out_shape=jax.ShapeDtypeStruct((Np, F_out), jnp.float32),
        grid_spec=pltpu.PrefetchScalarGridSpec(
            num_scalar_prefetch=0,
            grid=(Np // tq, Np // tk),
            in_specs=[
                pl.BlockSpec((tq, 1), lambda qi, ki: (qi, 0)),    # s1 (query)
                pl.BlockSpec((1, tk), lambda qi, ki: (0, ki)),    # s2 row (key)
                wh_spec,                                          # Wh
                pl.BlockSpec((tq, tk), lambda qi, ki: (qi, ki)),  # adj tile
            ],
            out_specs=pl.BlockSpec((tq, F_out), lambda qi, ki: (qi, 0)),
            scratch_shapes=[
                pltpu.VMEM((tq, 1), jnp.float32),       # running max
                pltpu.VMEM((tq, 1), jnp.float32),       # running denominator
                pltpu.VMEM((tq, F_out), jnp.float32),   # running numerator
            ],
        ),
        compiler_params=pltpu.CompilerParams(
            dimension_semantics=("parallel", "arbitrary"),
            vmem_limit_bytes=vmem_limit),
        cost_estimate=pl.CostEstimate(
            flops=2 * Np * Np * F_out,
            transcendentals=Np * Np,
            bytes_accessed=Np * Np * adj_itemsize + wh_bytes
            + Np * F_out * 4 + Np * 8),
    )(s1, s2_row, wh, adj)

    return out[:N]


# ---------------------------------------------------------------------------
# Reference + driver
# ---------------------------------------------------------------------------
def xavier_uniform(key, shape, gain):
    fan_in, fan_out = shape[0], shape[1]
    bound = gain * jnp.sqrt(6.0 / (fan_in + fan_out))
    return jax.random.uniform(key, shape, jnp.float32, -bound, bound)


def gat_reference(x, W, a, adj, *, leaky_alpha=0.2, elu_alpha=1.0):
    F_out = W.shape[1]
    Wh = x @ W
    e = Wh @ a[:F_out] + (Wh @ a[F_out:]).T
    e = jnp.where(e > 0, e, leaky_alpha * e)
    att = jnp.where(adj > 0, e, jnp.full_like(e, -9.0e15))
    att = jax.nn.softmax(att, axis=1)
    h = att @ Wh
    return jnp.where(h > 0, h, elu_alpha * (jnp.exp(h) - 1.0))


if __name__ == "__main__":
    key = jax.random.PRNGKey(0)
    k_x, k_adj, k_w, k_a = jax.random.split(key, 4)

    N = 200            # non-multiple of 128: exercises the padded-tail path
    in_features = 16
    out_features = 32
    alpha = 0.2        # LeakyReLU negative slope (self.Alpha)

    # deterministic parameter init (matches shapes in __init__)
    W = xavier_uniform(k_w, (in_features, out_features), gain=1.414)
    a = xavier_uniform(k_a, (2 * out_features, 1), gain=1.414)

    # deterministic inputs; self loops so every real row has a neighbour
    x = jax.random.normal(k_x, (N, in_features), jnp.float32)
    adj = (jax.random.uniform(k_adj, (N, N)) > 0.5).astype(jnp.float32)
    adj = jnp.maximum(adj, jnp.eye(N, dtype=jnp.float32))

    out = gat_forward(x, W, a, adj, leaky_alpha=alpha, elu_alpha=1.0)
    out = jax.block_until_ready(out)

    ref = gat_reference(x, W, a, adj, leaky_alpha=alpha, elu_alpha=1.0)
    assert out.shape == (N, out_features)
    err = float(jnp.max(jnp.abs(out - ref)))
    assert jnp.allclose(out, ref, atol=2e-3, rtol=2e-3), err

    print("KERNEL_OK")
</pallas_src>

<mosaic_0001>
module attributes {stable_mosaic.version = 11 : i64} {
  func.func @proj_kernel(%arg0: i32, %arg1: memref<256x16xf32, #tpu.memory_space<vmem>>, %arg2: memref<16x32xf32, #tpu.memory_space<vmem>>, %arg3: memref<16x2xf32, #tpu.memory_space<vmem>>, %arg4: memref<256x32xf32, #tpu.memory_space<vmem>>, %arg5: memref<256x1xf32, #tpu.memory_space<vmem>>, %arg6: memref<256x1xf32, #tpu.memory_space<vmem>>) attributes {dimension_semantics = [#tpu.dimension_semantics<parallel>], iteration_bounds = array<i64: 1>, scalar_prefetch = 0 : i64, scratch_operands = 0 : i64, tpu.core_type = #tpu.core_type<tc>, window_params = [{transform_indices = @transform_0, window_bounds = array<i64: 256, 16>}, {pipeline_mode = #tpu.pipeline_mode<synchronous>, transform_indices = @transform_1, window_bounds = array<i64: 16, 32>}, {pipeline_mode = #tpu.pipeline_mode<synchronous>, transform_indices = @transform_2, window_bounds = array<i64: 16, 2>}, {transform_indices = @transform_3, window_bounds = array<i64: 256, 32>}, {transform_indices = @transform_4, window_bounds = array<i64: 256, 1>}, {transform_indices = @transform_5, window_bounds = array<i64: 256, 1>}]} {
    %c0 = arith.constant 0 : index
    %c0_0 = arith.constant 0 : index
    %0 = vector.load %arg1[%c0, %c0_0] : memref<256x16xf32, #tpu.memory_space<vmem>>, vector<256x16xf32>
    %c0_1 = arith.constant 0 : index
    %c0_2 = arith.constant 0 : index
    %1 = vector.load %arg2[%c0_1, %c0_2] : memref<16x32xf32, #tpu.memory_space<vmem>>, vector<16x32xf32>
    %cst = arith.constant dense<0.000000e+00> : vector<256x32xf32>
    %2 = tpu.matmul %0, %1, %cst {dimension_numbers = #tpu.dot_dimension_numbers<[1], [0], [0], [1], [0, 0, 1, 1], [], []>} : vector<256x16xf32>, vector<16x32xf32>, vector<256x32xf32> -> vector<256x32xf32>
    %c0_3 = arith.constant 0 : index
    %c0_4 = arith.constant 0 : index
    %3 = vector.load %arg4[%c0_3, %c0_4] : memref<256x32xf32, #tpu.memory_space<vmem>>, vector<256x32xf32>
    tpu.vector_store %arg4[%c0_3, %c0_4], %2 {strides = array<i32>} : memref<256x32xf32, #tpu.memory_space<vmem>>, vector<256x32xf32>,
    %c0_5 = arith.constant 0 : index
    %c0_6 = arith.constant 0 : index
    %4 = vector.load %arg3[%c0_5, %c0_6] : memref<16x2xf32, #tpu.memory_space<vmem>>, vector<16x2xf32>
    %cst_7 = arith.constant dense<0.000000e+00> : vector<256x2xf32>
    %5 = tpu.matmul %0, %4, %cst_7 {dimension_numbers = #tpu.dot_dimension_numbers<[1], [0], [0], [1], [0, 0, 1, 1], [], []>} : vector<256x16xf32>, vector<16x2xf32>, vector<256x2xf32> -> vector<256x2xf32>
    %6 = vector.extract_strided_slice %5 {offsets = [0, 0], sizes = [256, 1], strides = [1, 1]} : vector<256x2xf32> to vector<256x1xf32>
    %c0_8 = arith.constant 0 : index
    %c0_9 = arith.constant 0 : index
    %7 = vector.load %arg5[%c0_8, %c0_9] : memref<256x1xf32, #tpu.memory_space<vmem>>, vector<256x1xf32>
    tpu.vector_store %arg5[%c0_8, %c0_9], %6 {strides = array<i32>} : memref<256x1xf32, #tpu.memory_space<vmem>>, vector<256x1xf32>,
    %8 = vector.extract_strided_slice %5 {offsets = [0, 1], sizes = [256, 1], strides = [1, 1]} : vector<256x2xf32> to vector<256x1xf32>
    %c0_10 = arith.constant 0 : index
    %c0_11 = arith.constant 0 : index
    %9 = vector.load %arg6[%c0_10, %c0_11] : memref<256x1xf32, #tpu.memory_space<vmem>>, vector<256x1xf32>
    tpu.vector_store %arg6[%c0_10, %c0_11], %8 {strides = array<i32>} : memref<256x1xf32, #tpu.memory_space<vmem>>, vector<256x1xf32>,
    return
  }
  func.func @transform_0(%arg0: i32) -> (i32, i32) {
    %c0_i32 = arith.constant 0 : i32
    %c0_i32_0 = arith.constant 0 : i32
    return %arg0, %c0_i32 : i32, i32
  }
  func.func @transform_1(%arg0: i32) -> (i32, i32) {
    %c0_i32 = arith.constant 0 : i32
    %c0_i32_0 = arith.constant 0 : i32
    %c0_i32_1 = arith.constant 0 : i32
    return %c0_i32, %c0_i32_0 : i32, i32
  }
  func.func @transform_2(%arg0: i32) -> (i32, i32) {
    %c0_i32 = arith.constant 0 : i32
    %c0_i32_0 = arith.constant 0 : i32
    %c0_i32_1 = arith.constant 0 : i32
    return %c0_i32, %c0_i32_0 : i32, i32
  }
  func.func @transform_3(%arg0: i32) -> (i32, i32) {
    %c0_i32 = arith.constant 0 : i32
    %c0_i32_0 = arith.constant 0 : i32
    return %arg0, %c0_i32 : i32, i32
  }
  func.func @transform_4(%arg0: i32) -> (i32, i32) {
    %c0_i32 = arith.constant 0 : i32
    %c0_i32_0 = arith.constant 0 : i32
    return %arg0, %c0_i32 : i32, i32
  }
  func.func @transform_5(%arg0: i32) -> (i32, i32) {
    %c0_i32 = arith.constant 0 : i32
    %c0_i32_0 = arith.constant 0 : i32
    return %arg0, %c0_i32 : i32, i32
  }
}

</mosaic_0001>

<llo_original>
// kernel: tpu_custom_call.1
$region0: #{tpu_custom_call.1}
  #allocation0 [shape = 'u32[]', space=smem, size = 0x4, offset = 0x4, fixed_abs, tag = 'smem constant byte address 0x4 - core index']
  #allocation1 [shape = 'u32[144,128]{1,0:T(1,128)}', space=vmem, size = 0x12000, scoped, tag = 'internal scratch']
  %s0 = inlined_call_operand.vmem [shape: f32[256,16], index: 0, kind: input, shape index: {}]
  %s1 = inlined_call_operand.vmem [shape: f32[16,32], index: 1, kind: input, shape index: {}]
  %s2 = inlined_call_operand.vmem [shape: f32[16,2], index: 2, kind: input, shape index: {}]
  %s3 = inlined_call_operand.vmem [shape: f32[256,32], index: 3, kind: output, shape index: {0}]
  %s4 = inlined_call_operand.vmem [shape: f32[256,1], index: 4, kind: output, shape index: {1}]
  %s5 = inlined_call_operand.vmem [shape: f32[256,1], index: 5, kind: output, shape index: {2}]
  %6 = xla_tuple %s3, %s4, %s5
  %s7 = sld [smem:[#allocation0]]
  $region38: #{tpu_custom_call.1} parent=0
    _
  %s9 = ssub.s32 1, %s7
  %s10 = scalar_select 0, %s9, %s7
  // Predicated region
  $region2: #{tpu_custom_call.1} parent=0 // pred_check
    _
  $region3: #{tpu_custom_call.1} parent=0 // pred_check_branch
    %12 = sbr.rel (0) target = $region5
  $region4: #{tpu_custom_call.1} parent=0 // pred_region
    _
  $region5: #{tpu_custom_call.1} parent=0 // pred_fallthru
    _
  // Predicated region
  $region6: #{tpu_custom_call.1} parent=0 // pred_check
    _
  $region7: #{tpu_custom_call.1} parent=0 // pred_check_branch
    %14 = sbr.rel (0) target = $region9
  $region8: #{tpu_custom_call.1} parent=0 // pred_region
    _
  $region9: #{tpu_custom_call.1} parent=0 // pred_fallthru
    _
  // Predicated region
  $region10: #{tpu_custom_call.1} parent=0 // pred_check
    _
  $region11: #{tpu_custom_call.1} parent=0 // pred_check_branch
    %16 = sbr.rel (0) target = $region13
  $region12: #{tpu_custom_call.1} parent=0 // pred_region
    _
  $region13: #{tpu_custom_call.1} parent=0 // pred_fallthru
    _
  %v17 = vld [vmem:[%s0] sm:$0xff]
  %v18 = vld [vmem:[%s0 + $0x8] sm:$0xff]
  %v19 = vld [vmem:[%s0 + $0x10] sm:$0xff]
  %v20 = vld [vmem:[%s0 + $0x18] sm:$0xff]
  %v21 = vld [vmem:[%s0 + $0x20] sm:$0xff]
  %v22 = vld [vmem:[%s0 + $0x28] sm:$0xff]
  %v23 = vld [vmem:[%s0 + $0x30] sm:$0xff]
  %v24 = vld [vmem:[%s0 + $0x38] sm:$0xff]
  %v25 = vld [vmem:[%s0 + $0x40] sm:$0xff]
  %v26 = vld [vmem:[%s0 + $0x48] sm:$0xff]
  %v27 = vld [vmem:[%s0 + $0x50] sm:$0xff]
  %v28 = vld [vmem:[%s0 + $0x58] sm:$0xff]
  %v29 = vld [vmem:[%s0 + $0x60] sm:$0xff]
  %v30 = vld [vmem:[%s0 + $0x68] sm:$0xff]
  %v31 = vld [vmem:[%s0 + $0x70] sm:$0xff]
  %v32 = vld [vmem:[%s0 + $0x78] sm:$0xff]
  %v33 = vld [vmem:[%s0 + $0x80] sm:$0xff]
  %v34 = vld [vmem:[%s0 + $0x88] sm:$0xff]
  %v35 = vld [vmem:[%s0 + $0x90] sm:$0xff]
  %v36 = vld [vmem:[%s0 + $0x98] sm:$0xff]
  %v37 = vld [vmem:[%s0 + $0xa0] sm:$0xff]
  %v38 = vld [vmem:[%s0 + $0xa8] sm:$0xff]
  %v39 = vld [vmem:[%s0 + $0xb0] sm:$0xff]
  %v40 = vld [vmem:[%s0 + $0xb8] sm:$0xff]
  %v41 = vld [vmem:[%s0 + $0xc0] sm:$0xff]
  %v42 = vld [vmem:[%s0 + $0xc8] sm:$0xff]
  %v43 = vld [vmem:[%s0 + $0xd0] sm:$0xff]
  %v44 = vld [vmem:[%s0 + $0xd8] sm:$0xff]
  %v45 = vld [vmem:[%s0 + $0xe0] sm:$0xff]
  %v46 = vld [vmem:[%s0 + $0xe8] sm:$0xff]
  %v47 = vld [vmem:[%s0 + $0xf0] sm:$0xff]
  %v48 = vld [vmem:[%s0 + $0xf8] sm:$0xff]
  %v49 = vld [vmem:[%s1] sm:$0xff]
  %v50 = vld [vmem:[%s1 + $0x8] sm:$0xff]
  %vm51 = vcmask 130048
  %v53 = vsel %vm51, %v17, 0
  %v56 = vsel %vm51, %v18, 0
  %v59 = vsel %vm51, %v19, 0
  %v62 = vsel %vm51, %v20, 0
  %v65 = vsel %vm51, %v21, 0
  %v68 = vsel %vm51, %v22, 0
  %v71 = vsel %vm51, %v23, 0
  %v74 = vsel %vm51, %v24, 0
  %v77 = vsel %vm51, %v25, 0
  %v80 = vsel %vm51, %v26, 0
  %v83 = vsel %vm51, %v27, 0
  %v86 = vsel %vm51, %v28, 0
  %v89 = vsel %vm51, %v29, 0
  %v92 = vsel %vm51, %v30, 0
  %v95 = vsel %vm51, %v31, 0
  %v98 = vsel %vm51, %v32, 0
  %v101 = vsel %vm51, %v33, 0
  %v104 = vsel %vm51, %v34, 0
  %v107 = vsel %vm51, %v35, 0
  %v110 = vsel %vm51, %v36, 0
  %v113 = vsel %vm51, %v37, 0
  %v116 = vsel %vm51, %v38, 0
  %v119 = vsel %vm51, %v39, 0
  %v122 = vsel %vm51, %v40, 0
  %v125 = vsel %vm51, %v41, 0
  %v128 = vsel %vm51, %v42, 0
  %v131 = vsel %vm51, %v43, 0
  %v134 = vsel %vm51, %v44, 0
  %v137 = vsel %vm51, %v45, 0
  %v140 = vsel %vm51, %v46, 0
  %v143 = vsel %vm51, %v47, 0
  %v146 = vsel %vm51, %v48, 0
  %148 = vmatprep.subr.mxu0 0.0
  %149 = vmatpush1.msra.mxu0 %v49
  %150 = vmatprep.subr.mxu0 0.0
  %151 = vmatpush1.msra.mxu0 %v50
  %152 = vmatprep.subr.mxu0 0.0
  %153 = vmatpush1.msra.mxu0 0.0
  %154 = vmatprep.subr.mxu0 0.0
  %155 = vmatpush1.msra.mxu0 0.0
  %156 = vmatprep.subr.mxu0 0.0
  %157 = vmatpush1.msra.mxu0 0.0
  %158 = vmatprep.subr.mxu0 0.0
  %159 = vmatpush1.msra.mxu0 0.0
  %160 = vmatprep.subr.mxu0 0.0
  %161 = vmatpush1.msra.mxu0 0.0
  %162 = vmatprep.subr.mxu0 0.0
  %163 = vmatpush1.msra.mxu0 0.0
  %164 = vmatprep.subr.mxu0 0.0
  %165 = vmatpush1.msra.mxu0 0.0
  %166 = vmatprep.subr.mxu0 0.0
  %167 = vmatpush1.msra.mxu0 0.0
  %168 = vmatprep.subr.mxu0 0.0
  %169 = vmatpush1.msra.mxu0 0.0
  %170 = vmatprep.subr.mxu0 0.0
  %171 = vmatpush1.msra.mxu0 0.0
  %172 = vmatprep.subr.mxu0 0.0
  %173 = vmatpush1.msra.mxu0 0.0
  %174 = vmatprep.subr.mxu0 0.0
  %175 = vmatpush1.msra.mxu0 0.0
  %176 = vmatprep.subr.mxu0 0.0
  %177 = vmatpush1.msra.mxu0 0.0
  %178 = vmatprep.subr.mxu0 0.0
  %179 = vmatpush1.msra.mxu0 0.0
  %180 = vmatprep.subr.mxu0 0.0
  %181 = vmatpush1.msra.mxu0 0.0
  %182 = vmatprep.subr.mxu0 0.0
  %183 = vmatpush1.msra.mxu0 0.0
  %184 = vmatprep.subr.mxu0 0.0
  %185 = vmatpush1.msra.mxu0 0.0
  %186 = vmatprep.subr.mxu0 0.0
  %187 = vmatpush1.msra.mxu0 0.0
  %188 = vmatprep.subr.mxu0 0.0
  %189 = vmatpush1.msra.mxu0 0.0
  %190 = vmatprep.subr.mxu0 0.0
  %191 = vmatpush1.msra.mxu0 0.0
  %192 = vmatprep.subr.mxu0 0.0
  %193 = vmatpush1.msra.mxu0 0.0
  %194 = vmatprep.subr.mxu0 0.0
  %195 = vmatpush1.msra.mxu0 0.0
  %196 = vmatprep.subr.mxu0 0.0
  %197 = vmatpush1.msra.mxu0 0.0
  %198 = vmatprep.subr.mxu0 0.0
  %199 = vmatpush1.msra.mxu0 0.0
  %200 = vmatprep.subr.mxu0 0.0
  %201 = vmatpush1.msra.mxu0 0.0
  %202 = vmatprep.subr.mxu0 0.0
  %203 = vmatpush1.msra.mxu0 0.0
  %204 = vmatprep.subr.mxu0 0.0
  %205 = vmatpush1.msra.mxu0 0.0
  %206 = vmatprep.subr.mxu0 0.0
  %207 = vmatpush1.msra.mxu0 0.0
  %208 = vmatprep.subr.mxu0 0.0
  %209 = vmatpush1.msra.mxu0 0.0
  %210 = vmatprep.subr.mxu0 0.0
  %211 = vmatpush1.msra.mxu0 0.0
  %212 = vmatprep.mubr.f32.mxu0 0.0
  %213 = vmatmul.mubr.f32.gmra.mrb[0].mxu0 %v53
  %v214 = vpop.f32.mrb[0].mxu0
  %v215 = vadd.f32 0.0, %v214
  %v216 = vpop.f32.mrb[0].mxu0
  %217 = vmatprep.mubr.f32.mxu0 0.0
  %218 = vmatmul.mubr.f32.gmra.mrb[0].mxu0 %v56
  %v219 = vpop.f32.mrb[0].mxu0
  %v220 = vadd.f32 0.0, %v219
  %v221 = vpop.f32.mrb[0].mxu0
  %222 = vmatprep.mubr.f32.mxu0 0.0
  %223 = vmatmul.mubr.f32.gmra.mrb[0].mxu0 %v59
  %v224 = vpop.f32.mrb[0].mxu0
  %v225 = vadd.f32 0.0, %v224
  %v226 = vpop.f32.mrb[0].mxu0
  %227 = vmatprep.mubr.f32.mxu0 0.0
  %228 = vmatmul.mubr.f32.gmra.mrb[0].mxu0 %v62
  %v229 = vpop.f32.mrb[0].mxu0
  %v230 = vadd.f32 0.0, %v229
  %v231 = vpop.f32.mrb[0].mxu0
  %232 = vmatprep.mubr.f32.mxu0 0.0
  %233 = vmatmul.mubr.f32.gmra.mrb[0].mxu0 %v65
  %v234 = vpop.f32.mrb[0].mxu0
  %v235 = vadd.f32 0.0, %v234
  %v236 = vpop.f32.mrb[0].mxu0
  %237 = vmatprep.mubr.f32.mxu0 0.0
  %238 = vmatmul.mubr.f32.gmra.mrb[0].mxu0 %v68
  %v239 = vpop.f32.mrb[0].mxu0
  %v240 = vadd.f32 0.0, %v239
  %v241 = vpop.f32.mrb[0].mxu0
  %242 = vmatprep.mubr.f32.mxu0 0.0
  %243 = vmatmul.mubr.f32.gmra.mrb[0].mxu0 %v71
  %v244 = vpop.f32.mrb[0].mxu0
  %v245 = vadd.f32 0.0, %v244
  %v246 = vpop.f32.mrb[0].mxu0
  %247 = vmatprep.mubr.f32.mxu0 0.0
  %248 = vmatmul.mubr.f32.gmra.mrb[0].mxu0 %v74
  %v249 = vpop.f32.mrb[0].mxu0
  %v250 = vadd.f32 0.0, %v249
  %v251 = vpop.f32.mrb[0].mxu0
  %252 = vmatprep.mubr.f32.mxu0 0.0
  %253 = vmatmul.mubr.f32.gmra.mrb[0].mxu0 %v77
  %v254 = vpop.f32.mrb[0].mxu0
  %v255 = vadd.f32 0.0, %v254
  %v256 = vpop.f32.mrb[0].mxu0
  %257 = vmatprep.mubr.f32.mxu0 0.0
  %258 = vmatmul.mubr.f32.gmra.mrb[0].mxu0 %v80
  %v259 = vpop.f32.mrb[0].mxu0
  %v260 = vadd.f32 0.0, %v259
  %v261 = vpop.f32.mrb[0].mxu0
  %262 = vmatprep.mubr.f32.mxu0 0.0
  %263 = vmatmul.mubr.f32.gmra.mrb[0].mxu0 %v83
  %v264 = vpop.f32.mrb[0].mxu0
  %v265 = vadd.f32 0.0, %v264
  %v266 = vpop.f32.mrb[0].mxu0
  %267 = vmatprep.mubr.f32.mxu0 0.0
  %268 = vmatmul.mubr.f32.gmra.mrb[0].mxu0 %v86
  %v269 = vpop.f32.mrb[0].mxu0
  %v270 = vadd.f32 0.0, %v269
  %v271 = vpop.f32.mrb[0].mxu0
  %272 = vmatprep.mubr.f32.mxu0 0.0
  %273 = vmatmul.mubr.f32.gmra.mrb[0].mxu0 %v89
  %v274 = vpop.f32.mrb[0].mxu0
  %v275 = vadd.f32 0.0, %v274
  %v276 = vpop.f32.mrb[0].mxu0
  %277 = vmatprep.mubr.f32.mxu0 0.0
  %278 = vmatmul.mubr.f32.gmra.mrb[0].mxu0 %v92
  %v279 = vpop.f32.mrb[0].mxu0
  %v280 = vadd.f32 0.0, %v279
  %v281 = vpop.f32.mrb[0].mxu0
  %282 = vmatprep.mubr.f32.mxu0 0.0
  %283 = vmatmul.mubr.f32.gmra.mrb[0].mxu0 %v95
  %v284 = vpop.f32.mrb[0].mxu0
  %v285 = vadd.f32 0.0, %v284
  %v286 = vpop.f32.mrb[0].mxu0
  %287 = vmatprep.mubr.f32.mxu0 0.0
  %288 = vmatmul.mubr.f32.gmra.mrb[0].mxu0 %v98
  %v289 = vpop.f32.mrb[0].mxu0
  %v290 = vadd.f32 0.0, %v289
  %v291 = vpop.f32.mrb[0].mxu0
  %292 = vmatprep.mubr.f32.mxu0 0.0
  %293 = vmatmul.mubr.f32.gmra.mrb[0].mxu0 %v101
  %v294 = vpop.f32.mrb[0].mxu0
  %v295 = vadd.f32 0.0, %v294
  %v296 = vpop.f32.mrb[0].mxu0
  %297 = vmatprep.mubr.f32.mxu0 0.0
  %298 = vmatmul.mubr.f32.gmra.mrb[0].mxu0 %v104
  %v299 = vpop.f32.mrb[0].mxu0
  %v300 = vadd.f32 0.0, %v299
  %v301 = vpop.f32.mrb[0].mxu0
  %302 = vmatprep.mubr.f32.mxu0 0.0
  %303 = vmatmul.mubr.f32.gmra.mrb[0].mxu0 %v107
  %v304 = vpop.f32.mrb[0].mxu0
  %v305 = vadd.f32 0.0, %v304
  %v306 = vpop.f32.mrb[0].mxu0
  %307 = vmatprep.mubr.f32.mxu0 0.0
  %308 = vmatmul.mubr.f32.gmra.mrb[0].mxu0 %v110
  %v309 = vpop.f32.mrb[0].mxu0
  %v310 = vadd.f32 0.0, %v309
  %v311 = vpop.f32.mrb[0].mxu0
  %312 = vmatprep.mubr.f32.mxu0 0.0
  %313 = vmatmul.mubr.f32.gmra.mrb[0].mxu0 %v113
  %v314 = vpop.f32.mrb[0].mxu0
  %v315 = vadd.f32 0.0, %v314
  %v316 = vpop.f32.mrb[0].mxu0
  %317 = vmatprep.mubr.f32.mxu0 0.0
  %318 = vmatmul.mubr.f32.gmra.mrb[0].mxu0 %v116
  %v319 = vpop.f32.mrb[0].mxu0
  %v320 = vadd.f32 0.0, %v319
  %v321 = vpop.f32.mrb[0].mxu0
  %322 = vmatprep.mubr.f32.mxu0 0.0
  %323 = vmatmul.mubr.f32.gmra.mrb[0].mxu0 %v119
  %v324 = vpop.f32.mrb[0].mxu0
  %v325 = vadd.f32 0.0, %v324
  %v326 = vpop.f32.mrb[0].mxu0
  %327 = vmatprep.mubr.f32.mxu0 0.0
  %328 = vmatmul.mubr.f32.gmra.mrb[0].mxu0 %v122
  %v329 = vpop.f32.mrb[0].mxu0
  %v330 = vadd.f32 0.0, %v329
  %v331 = vpop.f32.mrb[0].mxu0
  %332 = vmatprep.mubr.f32.mxu0 0.0
  %333 = vmatmul.mubr.f32.gmra.mrb[0].mxu0 %v125
  %v334 = vpop.f32.mrb[0].mxu0
  %v335 = vadd.f32 0.0, %v334
  %v336 = vpop.f32.mrb[0].mxu0
  %337 = vmatprep.mubr.f32.mxu0 0.0
  %338 = vmatmul.mubr.f32.gmra.mrb[0].mxu0 %v128
  %v339 = vpop.f32.mrb[0].mxu0
  %v340 = vadd.f32 0.0, %v339
  %v341 = vpop.f32.mrb[0].mxu0
  %342 = vmatprep.mubr.f32.mxu0 0.0
  %343 = vmatmul.mubr.f32.gmra.mrb[0].mxu0 %v131
  %v344 = vpop.f32.mrb[0].mxu0
  %v345 = vadd.f32 0.0, %v344
  %v346 = vpop.f32.mrb[0].mxu0
  %347 = vmatprep.mubr.f32.mxu0 0.0
  %348 = vmatmul.mubr.f32.gmra.mrb[0].mxu0 %v134
  %v349 = vpop.f32.mrb[0].mxu0
  %v350 = vadd.f32 0.0, %v349
  %v351 = vpop.f32.mrb[0].mxu0
  %352 = vmatprep.mubr.f32.mxu0 0.0
  %353 = vmatmul.mubr.f32.gmra.mrb[0].mxu0 %v137
  %v354 = vpop.f32.mrb[0].mxu0
  %v355 = vadd.f32 0.0, %v354
  %v356 = vpop.f32.mrb[0].mxu0
  %357 = vmatprep.mubr.f32.mxu0 0.0
  %358 = vmatmul.mubr.f32.gmra.mrb[0].mxu0 %v140
  %v359 = vpop.f32.mrb[0].mxu0
  %v360 = vadd.f32 0.0, %v359
  %v361 = vpop.f32.mrb[0].mxu0
  %362 = vmatprep.mubr.f32.mxu0 0.0
  %363 = vmatmul.mubr.f32.gmra.mrb[0].mxu0 %v143
  %v364 = vpop.f32.mrb[0].mxu0
  %v365 = vadd.f32 0.0, %v364
  %v366 = vpop.f32.mrb[0].mxu0
  %367 = vmatprep.mubr.f32.mxu0 0.0
  %368 = vmatmul.mubr.f32.gmra.mrb[0].mxu0 %v146
  %v369 = vpop.f32.mrb[0].mxu0
  %v370 = vadd.f32 0.0, %v369
  %v371 = vpop.f32.mrb[0].mxu0
  %372 = vdwg.mxu0
  %vm373 = vcmask 261120
  %374 = vst.msk [vmem:[%s3] sm:$0xff] %vm373, %v215
  %375 = vst.msk [vmem:[%s3 + $0x8] sm:$0xff] %vm373, %v220
  %376 = vst.msk [vmem:[%s3 + $0x10] sm:$0xff] %vm373, %v225
  %377 = vst.msk [vmem:[%s3 + $0x18] sm:$0xff] %vm373, %v230
  %378 = vst.msk [vmem:[%s3 + $0x20] sm:$0xff] %vm373, %v235
  %379 = vst.msk [vmem:[%s3 + $0x28] sm:$0xff] %vm373, %v240
  %380 = vst.msk [vmem:[%s3 + $0x30] sm:$0xff] %vm373, %v245
  %381 = vst.msk [vmem:[%s3 + $0x38] sm:$0xff] %vm373, %v250
  %382 = vst.msk [vmem:[%s3 + $0x40] sm:$0xff] %vm373, %v255
  %383 = vst.msk [vmem:[%s3 + $0x48] sm:$0xff] %vm373, %v260
  %384 = vst.msk [vmem:[%s3 + $0x50] sm:$0xff] %vm373, %v265
  %385 = vst.msk [vmem:[%s3 + $0x58] sm:$0xff] %vm373, %v270
  %386 = vst.msk [vmem:[%s3 + $0x60] sm:$0xff] %vm373, %v275
  %387 = vst.msk [vmem:[%s3 + $0x68] sm:$0xff] %vm373, %v280
  %388 = vst.msk [vmem:[%s3 + $0x70] sm:$0xff] %vm373, %v285
  %389 = vst.msk [vmem:[%s3 + $0x78] sm:$0xff] %vm373, %v290
  %390 = vst.msk [vmem:[%s3 + $0x80] sm:$0xff] %vm373, %v295
  %391 = vst.msk [vmem:[%s3 + $0x88] sm:$0xff] %vm373, %v300
  %392 = vst.msk [vmem:[%s3 + $0x90] sm:$0xff] %vm373, %v305
  %393 = vst.msk [vmem:[%s3 + $0x98] sm:$0xff] %vm373, %v310
  %394 = vst.msk [vmem:[%s3 + $0xa0] sm:$0xff] %vm373, %v315
  %395 = vst.msk [vmem:[%s3 + $0xa8] sm:$0xff] %vm373, %v320
  %396 = vst.msk [vmem:[%s3 + $0xb0] sm:$0xff] %vm373, %v325
  %397 = vst.msk [vmem:[%s3 + $0xb8] sm:$0xff] %vm373, %v330
  %398 = vst.msk [vmem:[%s3 + $0xc0] sm:$0xff] %vm373, %v335
  %399 = vst.msk [vmem:[%s3 + $0xc8] sm:$0xff] %vm373, %v340
  %400 = vst.msk [vmem:[%s3 + $0xd0] sm:$0xff] %vm373, %v345
  %401 = vst.msk [vmem:[%s3 + $0xd8] sm:$0xff] %vm373, %v350
  %402 = vst.msk [vmem:[%s3 + $0xe0] sm:$0xff] %vm373, %v355
  %403 = vst.msk [vmem:[%s3 + $0xe8] sm:$0xff] %vm373, %v360
  %404 = vst.msk [vmem:[%s3 + $0xf0] sm:$0xff] %vm373, %v365
  %405 = vst.msk [vmem:[%s3 + $0xf8] sm:$0xff] %vm373, %v370
  %v406 = vld [vmem:[%s2] sm:$0xff]
  %v407 = vld [vmem:[%s2 + $0x8] sm:$0xff]
  %408 = vmatprep.subr.mxu0 0.0
  %409 = vmatpush1.msra.mxu0 %v406
  %410 = vmatprep.subr.mxu0 0.0
  %411 = vmatpush1.msra.mxu0 %v407
  %412 = vmatprep.subr.mxu0 0.0
  %413 = vmatpush1.msra.mxu0 0.0
  %414 = vmatprep.subr.mxu0 0.0
  %415 = vmatpush1.msra.mxu0 0.0
  %416 = vmatprep.subr.mxu0 0.0
  %417 = vmatpush1.msra.mxu0 0.0
  %418 = vmatprep.subr.mxu0 0.0
  %419 = vmatpush1.msra.mxu0 0.0
  %420 = vmatprep.subr.mxu0 0.0
  %421 = vmatpush1.msra.mxu0 0.0
  %422 = vmatprep.subr.mxu0 0.0
  %423 = vmatpush1.msra.mxu0 0.0
  %424 = vmatprep.subr.mxu0 0.0
  %425 = vmatpush1.msra.mxu0 0.0
  %426 = vmatprep.subr.mxu0 0.0
  %427 = vmatpush1.msra.mxu0 0.0
  %428 = vmatprep.subr.mxu0 0.0
  %429 = vmatpush1.msra.mxu0 0.0
  %430 = vmatprep.subr.mxu0 0.0
  %431 = vmatpush1.msra.mxu0 0.0
  %432 = vmatprep.subr.mxu0 0.0
  %433 = vmatpush1.msra.mxu0 0.0
  %434 = vmatprep.subr.mxu0 0.0
  %435 = vmatpush1.msra.mxu0 0.0
  %436 = vmatprep.subr.mxu0 0.0
  %437 = vmatpush1.msra.mxu0 0.0
  %438 = vmatprep.subr.mxu0 0.0
  %439 = vmatpush1.msra.mxu0 0.0
  %440 = vmatprep.subr.mxu0 0.0
  %441 = vmatpush1.msra.mxu0 0.0
  %442 = vmatprep.subr.mxu0 0.0
  %443 = vmatpush1.msra.mxu0 0.0
  %444 = vmatprep.subr.mxu0 0.0
  %445 = vmatpush1.msra.mxu0 0.0
  %446 = vmatprep.subr.mxu0 0.0
  %447 = vmatpush1.msra.mxu0 0.0
  %448 = vmatprep.subr.mxu0 0.0
  %449 = vmatpush1.msra.mxu0 0.0
  %450 = vmatprep.subr.mxu0 0.0
  %451 = vmatpush1.msra.mxu0 0.0
  %452 = vmatprep.subr.mxu0 0.0
  %453 = vmatpush1.msra.mxu0 0.0
  %454 = vmatprep.subr.mxu0 0.0
  %455 = vmatpush1.msra.mxu0 0.0
  %456 = vmatprep.subr.mxu0 0.0
  %457 = vmatpush1.msra.mxu0 0.0
  %458 = vmatprep.subr.mxu0 0.0
  %459 = vmatpush1.msra.mxu0 0.0
  %460 = vmatprep.subr.mxu0 0.0
  %461 = vmatpush1.msra.mxu0 0.0
  %462 = vmatprep.subr.mxu0 0.0
  %463 = vmatpush1.msra.mxu0 0.0
  %464 = vmatprep.subr.mxu0 0.0
  %465 = vmatpush1.msra.mxu0 0.0
  %466 = vmatprep.subr.mxu0 0.0
  %467 = vmatpush1.msra.mxu0 0.0
  %468 = vmatprep.subr.mxu0 0.0
  %469 = vmatpush1.msra.mxu0 0.0
  %470 = vmatprep.subr.mxu0 0.0
  %471 = vmatpush1.msra.mxu0 0.0
  %472 = vmatprep.mubr.f32.mxu0 0.0
  %473 = vmatmul.mubr.f32.gmra.mrb[0].mxu0 %v53
  %v474 = vpop.f32.mrb[0].mxu0
  %v475 = vadd.f32 0.0, %v474
  %v476 = vpop.f32.mrb[0].mxu0
  %477 = vmatprep.mubr.f32.mxu0 0.0
  %478 = vmatmul.mubr.f32.gmra.mrb[0].mxu0 %v56
  %v479 = vpop.f32.mrb[0].mxu0
  %v480 = vadd.f32 0.0, %v479
  %v481 = vpop.f32.mrb[0].mxu0
  %482 = vmatprep.mubr.f32.mxu0 0.0
  %483 = vmatmul.mubr.f32.gmra.mrb[0].mxu0 %v59
  %v484 = vpop.f32.mrb[0].mxu0
  %v485 = vadd.f32 0.0, %v484
  %v486 = vpop.f32.mrb[0].mxu0
  %487 = vmatprep.mubr.f32.mxu0 0.0
  %488 = vmatmul.mubr.f32.gmra.mrb[0].mxu0 %v62
  %v489 = vpop.f32.mrb[0].mxu0
  %v490 = vadd.f32 0.0, %v489
  %v491 = vpop.f32.mrb[0].mxu0
  %492 = vmatprep.mubr.f32.mxu0 0.0
  %493 = vmatmul.mubr.f32.gmra.mrb[0].mxu0 %v65
  %v494 = vpop.f32.mrb[0].mxu0
  %v495 = vadd.f32 0.0, %v494
  %v496 = vpop.f32.mrb[0].mxu0
  %497 = vmatprep.mubr.f32.mxu0 0.0
  %498 = vmatmul.mubr.f32.gmra.mrb[0].mxu0 %v68
  %v499 = vpop.f32.mrb[0].mxu0
  %v500 = vadd.f32 0.0, %v499
  %v501 = vpop.f32.mrb[0].mxu0
  %502 = vmatprep.mubr.f32.mxu0 0.0
  %503 = vmatmul.mubr.f32.gmra.mrb[0].mxu0 %v71
  %v504 = vpop.f32.mrb[0].mxu0
  %v505 = vadd.f32 0.0, %v504
  %v506 = vpop.f32.mrb[0].mxu0
  %507 = vmatprep.mubr.f32.mxu0 0.0
  %508 = vmatmul.mubr.f32.gmra.mrb[0].mxu0 %v74
  %v509 = vpop.f32.mrb[0].mxu0
  %v510 = vadd.f32 0.0, %v509
  %v511 = vpop.f32.mrb[0].mxu0
  %512 = vmatprep.mubr.f32.mxu0 0.0
  %513 = vmatmul.mubr.f32.gmra.mrb[0].mxu0 %v77
  %v514 = vpop.f32.mrb[0].mxu0
  %v515 = vadd.f32 0.0, %v514
  %v516 = vpop.f32.mrb[0].mxu0
  %517 = vmatprep.mubr.f32.mxu0 0.0
  %518 = vmatmul.mubr.f32.gmra.mrb[0].mxu0 %v80
  %v519 = vpop.f32.mrb[0].mxu0
  %v520 = vadd.f32 0.0, %v519
  %v521 = vpop.f32.mrb[0].mxu0
  %522 = vmatprep.mubr.f32.mxu0 0.0
  %523 = vmatmul.mubr.f32.gmra.mrb[0].mxu0 %v83
  %v524 = vpop.f32.mrb[0].mxu0
  %v525 = vadd.f32 0.0, %v524
  %v526 = vpop.f32.mrb[0].mxu0
  %527 = vmatprep.mubr.f32.mxu0 0.0
  %528 = vmatmul.mubr.f32.gmra.mrb[0].mxu0 %v86
  %v529 = vpop.f32.mrb[0].mxu0
  %v530 = vadd.f32 0.0, %v529
  %v531 = vpop.f32.mrb[0].mxu0
  %532 = vmatprep.mubr.f32.mxu0 0.0
  %533 = vmatmul.mubr.f32.gmra.mrb[0].mxu0 %v89
  %v534 = vpop.f32.mrb[0].mxu0
  %v535 = vadd.f32 0.0, %v534
  %v536 = vpop.f32.mrb[0].mxu0
  %537 = vmatprep.mubr.f32.mxu0 0.0
  %538 = vmatmul.mubr.f32.gmra.mrb[0].mxu0 %v92
  %v539 = vpop.f32.mrb[0].mxu0
  %v540 = vadd.f32 0.0, %v539
  %v541 = vpop.f32.mrb[0].mxu0
  %542 = vmatprep.mubr.f32.mxu0 0.0
  %543 = vmatmul.mubr.f32.gmra.mrb[0].mxu0 %v95
  %v544 = vpop.f32.mrb[0].mxu0
  %v545 = vadd.f32 0.0, %v544
  %v546 = vpop.f32.mrb[0].mxu0
  %547 = vmatprep.mubr.f32.mxu0 0.0
  %548 = vmatmul.mubr.f32.gmra.mrb[0].mxu0 %v98
  %v549 = vpop.f32.mrb[0].mxu0
  %v550 = vadd.f32 0.0, %v549
  %v551 = vpop.f32.mrb[0].mxu0
  %552 = vmatprep.mubr.f32.mxu0 0.0
  %553 = vmatmul.mubr.f32.gmra.mrb[0].mxu0 %v101
  %v554 = vpop.f32.mrb[0].mxu0
  %v555 = vadd.f32 0.0, %v554
  %v556 = vpop.f32.mrb[0].mxu0
  %557 = vmatprep.mubr.f32.mxu0 0.0
  %558 = vmatmul.mubr.f32.gmra.mrb[0].mxu0 %v104
  %v559 = vpop.f32.mrb[0].mxu0
  %v560 = vadd.f32 0.0, %v559
  %v561 = vpop.f32.mrb[0].mxu0
  %562 = vmatprep.mubr.f32.mxu0 0.0
  %563 = vmatmul.mubr.f32.gmra.mrb[0].mxu0 %v107
  %v564 = vpop.f32.mrb[0].mxu0
  %v565 = vadd.f32 0.0, %v564
  %v566 = vpop.f32.mrb[0].mxu0
  %567 = vmatprep.mubr.f32.mxu0 0.0
  %568 = vmatmul.mubr.f32.gmra.mrb[0].mxu0 %v110
  %v569 = vpop.f32.mrb[0].mxu0
  %v570 = vadd.f32 0.0, %v569
  %v571 = vpop.f32.mrb[0].mxu0
  %572 = vmatprep.mubr.f32.mxu0 0.0
  %573 = vmatmul.mubr.f32.gmra.mrb[0].mxu0 %v113
  %v574 = vpop.f32.mrb[0].mxu0
  %v575 = vadd.f32 0.0, %v574
  %v576 = vpop.f32.mrb[0].mxu0
  %577 = vmatprep.mubr.f32.mxu0 0.0
  %578 = vmatmul.mubr.f32.gmra.mrb[0].mxu0 %v116
  %v579 = vpop.f32.mrb[0].mxu0
  %v580 = vadd.f32 0.0, %v579
  %v581 = vpop.f32.mrb[0].mxu0
  %582 = vmatprep.mubr.f32.mxu0 0.0
  %583 = vmatmul.mubr.f32.gmra.mrb[0].mxu0 %v119
  %v584 = vpop.f32.mrb[0].mxu0
  %v585 = vadd.f32 0.0, %v584
  %v586 = vpop.f32.mrb[0].mxu0
  %587 = vmatprep.mubr.f32.mxu0 0.0
  %588 = vmatmul.mubr.f32.gmra.mrb[0].mxu0 %v122
  %v589 = vpop.f32.mrb[0].mxu0
  %v590 = vadd.f32 0.0, %v589
  %v591 = vpop.f32.mrb[0].mxu0
  %592 = vmatprep.mubr.f32.mxu0 0.0
  %593 = vmatmul.mubr.f32.gmra.mrb[0].mxu0 %v125
  %v594 = vpop.f32.mrb[0].mxu0
  %v595 = vadd.f32 0.0, %v594
  %v596 = vpop.f32.mrb[0].mxu0
  %597 = vmatprep.mubr.f32.mxu0 0.0
  %598 = vmatmul.mubr.f32.gmra.mrb[0].mxu0 %v128
  %v599 = vpop.f32.mrb[0].mxu0
  %v600 = vadd.f32 0.0, %v599
  %v601 = vpop.f32.mrb[0].mxu0
  %602 = vmatprep.mubr.f32.mxu0 0.0
  %603 = vmatmul.mubr.f32.gmra.mrb[0].mxu0 %v131
  %v604 = vpop.f32.mrb[0].mxu0
  %v605 = vadd.f32 0.0, %v604
  %v606 = vpop.f32.mrb[0].mxu0
  %607 = vmatprep.mubr.f32.mxu0 0.0
  %608 = vmatmul.mubr.f32.gmra.mrb[0].mxu0 %v134
  %v609 = vpop.f32.mrb[0].mxu0
  %v610 = vadd.f32 0.0, %v609
  %v611 = vpop.f32.mrb[0].mxu0
  %612 = vmatprep.mubr.f32.mxu0 0.0
  %613 = vmatmul.mubr.f32.gmra.mrb[0].mxu0 %v137
  %v614 = vpop.f32.mrb[0].mxu0
  %v615 = vadd.f32 0.0, %v614
  %v616 = vpop.f32.mrb[0].mxu0
  %617 = vmatprep.mubr.f32.mxu0 0.0
  %618 = vmatmul.mubr.f32.gmra.mrb[0].mxu0 %v140
  %v619 = vpop.f32.mrb[0].mxu0
  %v620 = vadd.f32 0.0, %v619
  %v621 = vpop.f32.mrb[0].mxu0
  %622 = vmatprep.mubr.f32.mxu0 0.0
  %623 = vmatmul.mubr.f32.gmra.mrb[0].mxu0 %v143
  %v624 = vpop.f32.mrb[0].mxu0
  %v625 = vadd.f32 0.0, %v624
  %v626 = vpop.f32.mrb[0].mxu0
  %627 = vmatprep.mubr.f32.mxu0 0.0
  %628 = vmatmul.mubr.f32.gmra.mrb[0].mxu0 %v146
  %v629 = vpop.f32.mrb[0].mxu0
  %v630 = vadd.f32 0.0, %v629
  %v631 = vpop.f32.mrb[0].mxu0
  %632 = vdwg.mxu0
  %vm633 = vcmask 7168
  %634 = vst.msk [vmem:[%s4] sm:$0xff] %vm633, %v475
  %635 = vst.msk [vmem:[%s4 + $0x8] sm:$0xff] %vm633, %v480
  %636 = vst.msk [vmem:[%s4 + $0x10] sm:$0xff] %vm633, %v485
  %637 = vst.msk [vmem:[%s4 + $0x18] sm:$0xff] %vm633, %v490
  %638 = vst.msk [vmem:[%s4 + $0x20] sm:$0xff] %vm633, %v495
  %639 = vst.msk [vmem:[%s4 + $0x28] sm:$0xff] %vm633, %v500
  %640 = vst.msk [vmem:[%s4 + $0x30] sm:$0xff] %vm633, %v505
  %641 = vst.msk [vmem:[%s4 + $0x38] sm:$0xff] %vm633, %v510
  %642 = vst.msk [vmem:[%s4 + $0x40] sm:$0xff] %vm633, %v515
  %643 = vst.msk [vmem:[%s4 + $0x48] sm:$0xff] %vm633, %v520
  %644 = vst.msk [vmem:[%s4 + $0x50] sm:$0xff] %vm633, %v525
  %645 = vst.msk [vmem:[%s4 + $0x58] sm:$0xff] %vm633, %v530
  %646 = vst.msk [vmem:[%s4 + $0x60] sm:$0xff] %vm633, %v535
  %647 = vst.msk [vmem:[%s4 + $0x68] sm:$0xff] %vm633, %v540
  %648 = vst.msk [vmem:[%s4 + $0x70] sm:$0xff] %vm633, %v545
  %649 = vst.msk [vmem:[%s4 + $0x78] sm:$0xff] %vm633, %v550
  %650 = vst.msk [vmem:[%s4 + $0x80] sm:$0xff] %vm633, %v555
  %651 = vst.msk [vmem:[%s4 + $0x88] sm:$0xff] %vm633, %v560
  %652 = vst.msk [vmem:[%s4 + $0x90] sm:$0xff] %vm633, %v565
  %653 = vst.msk [vmem:[%s4 + $0x98] sm:$0xff] %vm633, %v570
  %654 = vst.msk [vmem:[%s4 + $0xa0] sm:$0xff] %vm633, %v575
  %655 = vst.msk [vmem:[%s4 + $0xa8] sm:$0xff] %vm633, %v580
  %656 = vst.msk [vmem:[%s4 + $0xb0] sm:$0xff] %vm633, %v585
  %657 = vst.msk [vmem:[%s4 + $0xb8] sm:$0xff] %vm633, %v590
  %658 = vst.msk [vmem:[%s4 + $0xc0] sm:$0xff] %vm633, %v595
  %659 = vst.msk [vmem:[%s4 + $0xc8] sm:$0xff] %vm633, %v600
  %660 = vst.msk [vmem:[%s4 + $0xd0] sm:$0xff] %vm633, %v605
  %661 = vst.msk [vmem:[%s4 + $0xd8] sm:$0xff] %vm633, %v610
  %662 = vst.msk [vmem:[%s4 + $0xe0] sm:$0xff] %vm633, %v615
  %663 = vst.msk [vmem:[%s4 + $0xe8] sm:$0xff] %vm633, %v620
  %664 = vst.msk [vmem:[%s4 + $0xf0] sm:$0xff] %vm633, %v625
  %665 = vst.msk [vmem:[%s4 + $0xf8] sm:$0xff] %vm633, %v630
  %698 = vrot.lane.b32.xlu0 %v475, 127
  %v699 = vpop.permute.xlu0 %698
  %700 = vrot.lane.b32.xlu0 %v480, 127
  %v701 = vpop.permute.xlu0 %700
  %702 = vrot.lane.b32.xlu0 %v485, 127
  %v703 = vpop.permute.xlu0 %702
  %704 = vrot.lane.b32.xlu0 %v490, 127
  %v705 = vpop.permute.xlu0 %704
  %706 = vrot.lane.b32.xlu0 %v495, 127
  %v707 = vpop.permute.xlu0 %706
  %708 = vrot.lane.b32.xlu0 %v500, 127
  %v709 = vpop.permute.xlu0 %708
  %710 = vrot.lane.b32.xlu0 %v505, 127
  %v711 = vpop.permute.xlu0 %710
  %712 = vrot.lane.b32.xlu0 %v510, 127
  %v713 = vpop.permute.xlu0 %712
  %714 = vrot.lane.b32.xlu0 %v515, 127
  %v715 = vpop.permute.xlu0 %714
  %716 = vrot.lane.b32.xlu0 %v520, 127
  %v717 = vpop.permute.xlu0 %716
  %718 = vrot.lane.b32.xlu0 %v525, 127
  %v719 = vpop.permute.xlu0 %718
  %720 = vrot.lane.b32.xlu0 %v530, 127
  %v721 = vpop.permute.xlu0 %720
  %722 = vrot.lane.b32.xlu0 %v535, 127
  %v723 = vpop.permute.xlu0 %722
  %724 = vrot.lane.b32.xlu0 %v540, 127
  %v725 = vpop.permute.xlu0 %724
  %726 = vrot.lane.b32.xlu0 %v545, 127
  %v727 = vpop.permute.xlu0 %726
  %728 = vrot.lane.b32.xlu0 %v550, 127
  %v729 = vpop.permute.xlu0 %728
  %730 = vrot.lane.b32.xlu0 %v555, 127
  %v731 = vpop.permute.xlu0 %730
  %732 = vrot.lane.b32.xlu0 %v560, 127
  %v733 = vpop.permute.xlu0 %732
  %734 = vrot.lane.b32.xlu0 %v565, 127
  %v735 = vpop.permute.xlu0 %734
  %736 = vrot.lane.b32.xlu0 %v570, 127
  %v737 = vpop.permute.xlu0 %736
  %738 = vrot.lane.b32.xlu0 %v575, 127
  %v739 = vpop.permute.xlu0 %738
  %740 = vrot.lane.b32.xlu0 %v580, 127
  %v741 = vpop.permute.xlu0 %740
  %742 = vrot.lane.b32.xlu0 %v585, 127
  %v743 = vpop.permute.xlu0 %742
  %744 = vrot.lane.b32.xlu0 %v590, 127
  %v745 = vpop.permute.xlu0 %744
  %746 = vrot.lane.b32.xlu0 %v595, 127
  %v747 = vpop.permute.xlu0 %746
  %748 = vrot.lane.b32.xlu0 %v600, 127
  %v749 = vpop.permute.xlu0 %748
  %750 = vrot.lane.b32.xlu0 %v605, 127
  %v751 = vpop.permute.xlu0 %750
  %752 = vrot.lane.b32.xlu0 %v610, 127
  %v753 = vpop.permute.xlu0 %752
  %754 = vrot.lane.b32.xlu0 %v615, 127
  %v755 = vpop.permute.xlu0 %754
  %756 = vrot.lane.b32.xlu0 %v620, 127
  %v757 = vpop.permute.xlu0 %756
  %758 = vrot.lane.b32.xlu0 %v625, 127
  %v759 = vpop.permute.xlu0 %758
  %760 = vrot.lane.b32.xlu0 %v630, 127
  %v761 = vpop.permute.xlu0 %760
  %794 = vst.msk [vmem:[%s5] sm:$0xff] %vm633, %v699
  %795 = vst.msk [vmem:[%s5 + $0x8] sm:$0xff] %vm633, %v701
  %796 = vst.msk [vmem:[%s5 + $0x10] sm:$0xff] %vm633, %v703
  %797 = vst.msk [vmem:[%s5 + $0x18] sm:$0xff] %vm633, %v705
  %798 = vst.msk [vmem:[%s5 + $0x20] sm:$0xff] %vm633, %v707
  %799 = vst.msk [vmem:[%s5 + $0x28] sm:$0xff] %vm633, %v709
  %800 = vst.msk [vmem:[%s5 + $0x30] sm:$0xff] %vm633, %v711
  %801 = vst.msk [vmem:[%s5 + $0x38] sm:$0xff] %vm633, %v713
  %802 = vst.msk [vmem:[%s5 + $0x40] sm:$0xff] %vm633, %v715
  %803 = vst.msk [vmem:[%s5 + $0x48] sm:$0xff] %vm633, %v717
  %804 = vst.msk [vmem:[%s5 + $0x50] sm:$0xff] %vm633, %v719
  %805 = vst.msk [vmem:[%s5 + $0x58] sm:$0xff] %vm633, %v721
  %806 = vst.msk [vmem:[%s5 + $0x60] sm:$0xff] %vm633, %v723
  %807 = vst.msk [vmem:[%s5 + $0x68] sm:$0xff] %vm633, %v725
  %808 = vst.msk [vmem:[%s5 + $0x70] sm:$0xff] %vm633, %v727
  %809 = vst.msk [vmem:[%s5 + $0x78] sm:$0xff] %vm633, %v729
  %810 = vst.msk [vmem:[%s5 + $0x80] sm:$0xff] %vm633, %v731
  %811 = vst.msk [vmem:[%s5 + $0x88] sm:$0xff] %vm633, %v733
  %812 = vst.msk [vmem:[%s5 + $0x90] sm:$0xff] %vm633, %v735
  %813 = vst.msk [vmem:[%s5 + $0x98] sm:$0xff] %vm633, %v737
  %814 = vst.msk [vmem:[%s5 + $0xa0] sm:$0xff] %vm633, %v739
  %815 = vst.msk [vmem:[%s5 + $0xa8] sm:$0xff] %vm633, %v741
  %816 = vst.msk [vmem:[%s5 + $0xb0] sm:$0xff] %vm633, %v743
  %817 = vst.msk [vmem:[%s5 + $0xb8] sm:$0xff] %vm633, %v745
  %818 = vst.msk [vmem:[%s5 + $0xc0] sm:$0xff] %vm633, %v747
  %819 = vst.msk [vmem:[%s5 + $0xc8] sm:$0xff] %vm633, %v749
  %820 = vst.msk [vmem:[%s5 + $0xd0] sm:$0xff] %vm633, %v751
  %821 = vst.msk [vmem:[%s5 + $0xd8] sm:$0xff] %vm633, %v753
  %822 = vst.msk [vmem:[%s5 + $0xe0] sm:$0xff] %vm633, %v755
  %823 = vst.msk [vmem:[%s5 + $0xe8] sm:$0xff] %vm633, %v757
  %824 = vst.msk [vmem:[%s5 + $0xf0] sm:$0xff] %vm633, %v759
  %825 = vst.msk [vmem:[%s5 + $0xf8] sm:$0xff] %vm633, %v761
  // Predicated region
  $region14: #{tpu_custom_call.1} parent=0 // pred_check
    _
  $region15: #{tpu_custom_call.1} parent=0 // pred_check_branch
    %827 = sbr.rel (0) target = $region17
  $region16: #{tpu_custom_call.1} parent=0 // pred_region
    _
  $region17: #{tpu_custom_call.1} parent=0 // pred_fallthru
    _
  // Predicated region
  $region18: #{tpu_custom_call.1} parent=0 // pred_check
    _
  $region19: #{tpu_custom_call.1} parent=0 // pred_check_branch
    %829 = sbr.rel (0) target = $region21
  $region20: #{tpu_custom_call.1} parent=0 // pred_region
    _
  $region21: #{tpu_custom_call.1} parent=0 // pred_fallthru
    _
  // Predicated region
  $region22: #{tpu_custom_call.1} parent=0 // pred_check
    _
  $region23: #{tpu_custom_call.1} parent=0 // pred_check_branch
    %831 = sbr.rel (0) target = $region25
  $region24: #{tpu_custom_call.1} parent=0 // pred_region
    _
  $region25: #{tpu_custom_call.1} parent=0 // pred_fallthru
    _
  // Predicated region
  $region26: #{tpu_custom_call.1} parent=0 // pred_check
    _
  $region27: #{tpu_custom_call.1} parent=0 // pred_check_branch
    %833 = sbr.rel (0) target = $region29
  $region28: #{tpu_custom_call.1} parent=0 // pred_region
    _
  $region29: #{tpu_custom_call.1} parent=0 // pred_fallthru
    _
  // Predicated region
  $region30: #{tpu_custom_call.1} parent=0 // pred_check
    _
  $region31: #{tpu_custom_call.1} parent=0 // pred_check_branch
    %835 = sbr.rel (0) target = $region33
  $region32: #{tpu_custom_call.1} parent=0 // pred_region
    _
  $region33: #{tpu_custom_call.1} parent=0 // pred_fallthru
    _
  // Predicated region
  $region34: #{tpu_custom_call.1} parent=0 // pred_check
    _
  $region35: #{tpu_custom_call.1} parent=0 // pred_check_branch
    %837 = sbr.rel (0) target = $region37
  $region36: #{tpu_custom_call.1} parent=0 // pred_region
    _
  $region37: #{tpu_custom_call.1} parent=0 // pred_fallthru
    _

</llo_original>
